<compile_context>
chip_gen: v7x
topology: tpu7x:2x2x1
jax: 0.10.0
libtpu: 0.0.40
codegen_flags: <defaults>
</compile_context>

<pallas_src>
import jax
import jax.numpy as jnp
from jax.experimental import pallas as pl
from jax.experimental.pallas import tpu as pltpu


_NEG_BIG = -1e30  # bias for padded classes -> exp(pad - max) underflows to 0.0


def _round_up(v: int, m: int) -> int:
    return (v + m - 1) // m * m


def _ccat_kernel(x_ref, w_ref, b_ref, thr_ref, out_ref, acc_ref):
    """One (batch-tile i, reduction-tile k) grid step.

    x_ref:   (TB, TD)   bf16  activation tile
    w_ref:   (TD, NCp)  bf16  weight tile (classes padded to a multiple of 128)
    b_ref:   (1, NCp)   f32   bias (padded entries = -1e30)
    thr_ref: (1,)       f32   SMEM scalar holding 1/threshold
    out_ref: (TB, 128)  i32   lane-dense detection flags (same flag in all lanes)
    acc_ref: (TB, NCp)  f32   VMEM logits accumulator, persists across k
    """
    k = pl.program_id(1)

    # Init: fold the bias into the accumulator.
    @pl.when(k == 0)
    def _():
        acc_ref[...] = jnp.broadcast_to(b_ref[...], acc_ref.shape)

    # MXU partial product, f32 accumulation.
    acc_ref[...] += jnp.dot(
        x_ref[...], w_ref[...], preferred_element_type=jnp.float32
    )

    # Finalize:  max softmax prob = 1/sum(exp(logits - max))
    #            confidence > thr  <=>  denom < 1/thr     (thr > 0)
    @pl.when(k == pl.num_programs(1) - 1)
    def _():
        logits = acc_ref[...]                                    # (TB, NCp) f32
        m = jnp.max(logits, axis=-1, keepdims=True)              # (TB, 1)
        denom = jnp.sum(jnp.exp(logits - m), axis=-1, keepdims=True)
        flag = (denom < thr_ref[0]).astype(jnp.int32)            # (TB, 1)
        out_ref[...] = jnp.broadcast_to(flag, out_ref.shape)     # lane-dense


def _ccat_detector_impl(x_nchw, w, b, threshold):
    """x_nchw: (B, C, H, W); w: (C*H*W, NC); b: (NC,). Returns bool (B,)."""
    B = x_nchw.shape[0]
    D = x_nchw.shape[1] * x_nchw.shape[2] * x_nchw.shape[3]
    NC = w.shape[1]

    # ---- tiling (sized to fit v7x's 64 MiB VMEM as well as v5e/v6e) ----
    TB = min(256, _round_up(B, 16))       # batch tile (sublane dim, bf16-friendly)
    TD = min(2048, _round_up(D, 128))     # reduction tile (lane dim of x)
    NCp = _round_up(NC, 128)              # lane-dense class dim

    B_pad = _round_up(B, TB)
    D_pad = _round_up(D, TD)
    nb = B_pad // TB
    nk = D_pad // TD

    # ---- wrapper-side glue: flatten NCHW, cast matmul operands to bf16, pad ----
    x_bf = x_nchw.reshape(B, D).astype(jnp.bfloat16)
    x_p = jnp.pad(x_bf, ((0, B_pad - B), (0, D_pad - D)))
    w_p = jnp.pad(w.astype(jnp.bfloat16), ((0, D_pad - D), (0, NCp - NC)))
    b_p = jnp.full((1, NCp), _NEG_BIG, jnp.float32).at[0, :NC].set(
        b.astype(jnp.float32))
    inv_thr = (1.0 / jnp.asarray(threshold, jnp.float32)).reshape(1)

    grid_spec = pltpu.PrefetchScalarGridSpec(
        num_scalar_prefetch=0,
        grid=(nb, nk),
        in_specs=[
            pl.BlockSpec((TB, TD), lambda i, k: (i, k)),          # x tile
            pl.BlockSpec((TD, NCp), lambda i, k: (k, 0)),         # W tile
            pl.BlockSpec((1, NCp), lambda i, k: (0, 0)),          # bias (resident)
            pl.BlockSpec(memory_space=pltpu.MemorySpace.SMEM),    # 1/threshold
        ],
        out_specs=pl.BlockSpec((TB, 128), lambda i, k: (i, 0)),
        scratch_shapes=[pltpu.VMEM((TB, NCp), jnp.float32)],
    )

    out_i32 = pl.pallas_call(
        _ccat_kernel,
        out_shape=jax.ShapeDtypeStruct((B_pad, 128), jnp.int32),
        grid_spec=grid_spec,
        compiler_params=pltpu.CompilerParams(
            dimension_semantics=("parallel", "arbitrary"),
            vmem_limit_bytes=32 * 1024 * 1024,
        ),
    )(x_p, w_p, b_p, inv_thr)

    return out_i32[:B, 0].astype(jnp.bool_)


ccat_detector = jax.jit(_ccat_detector_impl)


if __name__ == "__main__":
    # small, deterministic setup
    B, C, H, W = 2, 4, 16, 16
    NUM_CLASSES = 10
    THRESHOLD = 0.5
    D = C * H * W

    key = jax.random.PRNGKey(0)
    kx, kw, kb = jax.random.split(key, 3)

    x = jax.random.normal(kx, (B, C, H, W), dtype=jnp.float32)
    w = jax.random.normal(kw, (D, NUM_CLASSES), dtype=jnp.float32) * 0.05
    b = jax.random.normal(kb, (NUM_CLASSES,), dtype=jnp.float32) * 0.05

    out = jax.block_until_ready(ccat_detector(x, w, b, THRESHOLD))

    # pure-JAX f32 reference mirroring the PyTorch forward
    logits = x.reshape(B, -1) @ w + b
    prob = jax.nn.softmax(logits, axis=1)
    conf = prob.max(axis=1)
    ref = conf > THRESHOLD

    assert out.shape == (B,)
    assert out.dtype == jnp.bool_
    # the kernel uses a bf16 matmul; allow a disagreement only when the f32
    # confidence sits inside the bf16 rounding band around the threshold
    near = jnp.abs(conf - THRESHOLD) < 2e-2
    assert bool(jnp.all((out == ref) | near)), (out, ref, conf)

    print("KERNEL_OK")
</pallas_src>

<mosaic_0001>
module attributes {stable_mosaic.version = 11 : i64} {
  func.func @_ccat_kernel(%arg0: i32, %arg1: i32, %arg2: memref<16x1024xbf16, #tpu.memory_space<vmem>>, %arg3: memref<1024x128xbf16, #tpu.memory_space<vmem>>, %arg4: memref<1x128xf32, #tpu.memory_space<vmem>>, %arg5: memref<1xf32, #tpu.memory_space<smem>>, %arg6: memref<16x128xi32, #tpu.memory_space<vmem>>, %arg7: memref<16x128xf32, #tpu.memory_space<vmem>>) attributes {dimension_semantics = [#tpu.dimension_semantics<parallel>, #tpu.dimension_semantics<arbitrary>], iteration_bounds = array<i64: 1, 1>, scalar_prefetch = 0 : i64, scratch_operands = 1 : i64, tpu.core_type = #tpu.core_type<tc>, window_params = [{transform_indices = @transform_0, window_bounds = array<i64: 16, 1024>}, {transform_indices = @transform_1, window_bounds = array<i64: 1024, 128>}, {pipeline_mode = #tpu.pipeline_mode<synchronous>, transform_indices = @transform_2, window_bounds = array<i64: 1, 128>}, {transform_indices = @transform_3, window_bounds = array<i64: 1>}, {transform_indices = @transform_4, window_bounds = array<i64: 16, 128>}]} {
    %c0_i32 = arith.constant 0 : i32
    %0 = arith.cmpi eq, %arg1, %c0_i32 : i32
    %1 = arith.extui %0 : i1 to i32
    %c0_i32_0 = arith.constant 0 : i32
    %2 = arith.cmpi ne, %1, %c0_i32_0 : i32
    scf.if %2 {
      %c0_10 = arith.constant 0 : index
      %c0_11 = arith.constant 0 : index
      %12 = vector.load %arg4[%c0_10, %c0_11] : memref<1x128xf32, #tpu.memory_space<vmem>>, vector<1x128xf32>
      %13 = vector.shape_cast %12 : vector<1x128xf32> to vector<1x128xf32>
      %14 = vector.broadcast %13 : vector<1x128xf32> to vector<16x128xf32>
      %c0_12 = arith.constant 0 : index
      %c0_13 = arith.constant 0 : index
      %15 = vector.load %arg7[%c0_12, %c0_13] : memref<16x128xf32, #tpu.memory_space<vmem>>, vector<16x128xf32>
      tpu.vector_store %arg7[%c0_12, %c0_13], %14 {strides = array<i32>} : memref<16x128xf32, #tpu.memory_space<vmem>>, vector<16x128xf32>,
    } else {
    }
    %c0 = arith.constant 0 : index
    %c0_1 = arith.constant 0 : index
    %3 = vector.load %arg7[%c0, %c0_1] : memref<16x128xf32, #tpu.memory_space<vmem>>, vector<16x128xf32>
    %c0_2 = arith.constant 0 : index
    %c0_3 = arith.constant 0 : index
    %4 = vector.load %arg2[%c0_2, %c0_3] : memref<16x1024xbf16, #tpu.memory_space<vmem>>, vector<16x1024xbf16>
    %c0_4 = arith.constant 0 : index
    %c0_5 = arith.constant 0 : index
    %5 = vector.load %arg3[%c0_4, %c0_5] : memref<1024x128xbf16, #tpu.memory_space<vmem>>, vector<1024x128xbf16>
    %cst = arith.constant dense<0.000000e+00> : vector<16x128xf32>
    %6 = tpu.matmul %4, %5, %cst {dimension_numbers = #tpu.dot_dimension_numbers<[1], [0], [0], [1], [0, 0, 1, 1], [], []>} : vector<16x1024xbf16>, vector<1024x128xbf16>, vector<16x128xf32> -> vector<16x128xf32>
    %7 = arith.addf %3, %6 : vector<16x128xf32>
    %c0_6 = arith.constant 0 : index
    %c0_7 = arith.constant 0 : index
    %8 = vector.load %arg7[%c0_6, %c0_7] : memref<16x128xf32, #tpu.memory_space<vmem>>, vector<16x128xf32>
    tpu.vector_store %arg7[%c0_6, %c0_7], %7 {strides = array<i32>} : memref<16x128xf32, #tpu.memory_space<vmem>>, vector<16x128xf32>,
    %c0_i32_8 = arith.constant 0 : i32
    %9 = arith.cmpi eq, %arg1, %c0_i32_8 : i32
    %10 = arith.extui %9 : i1 to i32
    %c0_i32_9 = arith.constant 0 : i32
    %11 = arith.cmpi ne, %10, %c0_i32_9 : i32
    scf.if %11 {
      %c0_10 = arith.constant 0 : index
      %c0_11 = arith.constant 0 : index
      %12 = vector.load %arg7[%c0_10, %c0_11] : memref<16x128xf32, #tpu.memory_space<vmem>>, vector<16x128xf32>
      %cst_12 = arith.constant dense<0xFF800000> : vector<16xf32>
      %13 = vector.multi_reduction <maximumf>, %12, %cst_12 [1] : vector<16x128xf32> to vector<16xf32>
      %14 = vector.shape_cast %13 : vector<16xf32> to vector<16x1xf32>
      %15 = vector.broadcast %14 : vector<16x1xf32> to vector<16x128xf32>
      %16 = arith.subf %12, %15 : vector<16x128xf32>
      %17 = math.exp %16 : vector<16x128xf32>
      %cst_13 = arith.constant dense<0.000000e+00> : vector<16xf32>
      %18 = vector.multi_reduction <add>, %17, %cst_13 [1] : vector<16x128xf32> to vector<16xf32>
      %19 = vector.shape_cast %18 : vector<16xf32> to vector<16x1xf32>
      %c0_14 = arith.constant 0 : index
      %20 = memref.load %arg5[%c0_14] : memref<1xf32, #tpu.memory_space<smem>>
      %21 = vector.broadcast %20 : f32 to vector<16x1xf32>
      %22 = arith.cmpf olt, %19, %21 : vector<16x1xf32>
      %23 = arith.extui %22 : vector<16x1xi1> to vector<16x1xi32>
      %24 = vector.shape_cast %23 : vector<16x1xi32> to vector<16x1xi32>
      %25 = vector.broadcast %24 : vector<16x1xi32> to vector<16x128xi32>
      %c0_15 = arith.constant 0 : index
      %c0_16 = arith.constant 0 : index
      %26 = vector.load %arg6[%c0_15, %c0_16] : memref<16x128xi32, #tpu.memory_space<vmem>>, vector<16x128xi32>
      tpu.vector_store %arg6[%c0_15, %c0_16], %25 {strides = array<i32>} : memref<16x128xi32, #tpu.memory_space<vmem>>, vector<16x128xi32>,
    } else {
    }
    return
  }
  func.func @transform_0(%arg0: i32, %arg1: i32) -> (i32, i32) {
    %c0_i32 = arith.constant 0 : i32
    return %arg0, %arg1 : i32, i32
  }
  func.func @transform_1(%arg0: i32, %arg1: i32) -> (i32, i32) {
    %c0_i32 = arith.constant 0 : i32
    %c0_i32_0 = arith.constant 0 : i32
    return %arg1, %c0_i32 : i32, i32
  }
  func.func @transform_2(%arg0: i32, %arg1: i32) -> (i32, i32) {
    %c0_i32 = arith.constant 0 : i32
    %c0_i32_0 = arith.constant 0 : i32
    %c0_i32_1 = arith.constant 0 : i32
    return %c0_i32, %c0_i32_0 : i32, i32
  }
  func.func @transform_3(%arg0: i32, %arg1: i32) -> i32 {
    %c0_i32 = arith.constant 0 : i32
    %c0_i32_0 = arith.constant 0 : i32
    return %c0_i32 : i32
  }
  func.func @transform_4(%arg0: i32, %arg1: i32) -> (i32, i32) {
    %c0_i32 = arith.constant 0 : i32
    %c0_i32_0 = arith.constant 0 : i32
    return %arg0, %c0_i32 : i32, i32
  }
}

</mosaic_0001>

<llo_original>
// kernel: _ccat_detector_impl.1
$region0: #{_ccat_detector_impl.1}
  #allocation0 [shape = 'u32[]', space=smem, size = 0x4, offset = 0x4, fixed_abs, tag = 'smem constant byte address 0x4 - core index']
  #allocation1 [shape = 'u32[144,128]{1,0:T(1,128)}', space=vmem, size = 0x12000, scoped, tag = 'internal scratch']
  #allocation2 [shape = 'f32[16,128]{1,0:T(8,128)}', space=vmem, size = 0x2000, scoped, tag = 'scratch operand']
  #allocation3 [shape = 'f32[1]{0:T(128)S(6)}', space=smem, size = 0x200, scoped, tag = 'scoped memory for _ccat_detector_impl.1']
  %s0 = inlined_call_operand.vmem [shape: bf16[16,1024], index: 0, kind: input, shape index: {}]
  %s1 = inlined_call_operand.vmem [shape: bf16[1024,128], index: 1, kind: input, shape index: {}]
  %s2 = inlined_call_operand.vmem [shape: f32[1,128], index: 2, kind: input, shape index: {}]
  %s3 = inlined_call_operand.<no memory space> [shape: f32[1], index: 3, kind: input, shape index: {}]
  %s4 = inlined_call_operand.vmem [shape: s32[16,128], index: 4, kind: output, shape index: {}]
  %s5 = sld [smem:[#allocation0]]
  $region34: #{_ccat_detector_impl.1} parent=0
    _
  %s7 = ssub.s32 1, %s5
  %s8 = scalar_select 0, %s7, %s5
  %9 = sst [smem:[#allocation3]] %s3
  // Predicated region
  $region2: #{_ccat_detector_impl.1} parent=0 // pred_check
    _
  $region3: #{_ccat_detector_impl.1} parent=0 // pred_check_branch
    %11 = sbr.rel (0) target = $region5
  $region4: #{_ccat_detector_impl.1} parent=0 // pred_region
    _
  $region5: #{_ccat_detector_impl.1} parent=0 // pred_fallthru
    _
  // Predicated region
  $region6: #{_ccat_detector_impl.1} parent=0 // pred_check
    _
  $region7: #{_ccat_detector_impl.1} parent=0 // pred_check_branch
    %13 = sbr.rel (0) target = $region9
  $region8: #{_ccat_detector_impl.1} parent=0 // pred_region
    _
  $region9: #{_ccat_detector_impl.1} parent=0 // pred_fallthru
    _
  // Predicated region
  $region10: #{_ccat_detector_impl.1} parent=0 // pred_check
    _
  $region11: #{_ccat_detector_impl.1} parent=0 // pred_check_branch
    %15 = sbr.rel (0) target = $region13
  $region12: #{_ccat_detector_impl.1} parent=0 // pred_region
    _
  $region13: #{_ccat_detector_impl.1} parent=0 // pred_fallthru
    _
  // Predicated region
  $region14: #{_ccat_detector_impl.1} parent=0 // pred_check
    _
  $region15: #{_ccat_detector_impl.1} parent=0 // pred_check_branch
    %17 = sbr.rel (0) target = $region17
  $region16: #{_ccat_detector_impl.1} parent=0 // pred_region
    _
  $region17: #{_ccat_detector_impl.1} parent=0 // pred_fallthru
    _
  %p19 = scmp.eq.s32.totalorder 0, 0
  // Predicated region
  $region18: #{_ccat_detector_impl.1} parent=0 // pred_check
    %p20 = pneg %p19
  $region19: #{_ccat_detector_impl.1} parent=0 // pred_check_branch
    %22 = sbr.rel (%p20) target = $region21
  $region20: #{_ccat_detector_impl.1} parent=0 // pred_region
    %v23 = vld [vmem:[%s2] sm:$0x1]
    %v25 = vlaneseq
    %v26 = vshrl.u32 %v25, 7
    %v27 = vsub.s32 0, %v26
    %v28 = vrot.slane %v23, %v27
    %30 = vst [vmem:[#allocation2] sm:$0xff] %v28
    %31 = vst [vmem:[#allocation2 + $0x8] sm:$0xff] %v28
  $region21: #{_ccat_detector_impl.1} parent=0 // pred_fallthru
    _
  %v32 = vld [vmem:[#allocation2] sm:$0xff]
  %v33 = vld [vmem:[#allocation2 + $0x8] sm:$0xff]
  %v34 = vld [vmem:[%s0] sm:$0xff]
  %v35 = vld [vmem:[%s0 + $0x8] sm:$0xff]
  %v36 = vld [vmem:[%s0 + $0x10] sm:$0xff]
  %v37 = vld [vmem:[%s0 + $0x18] sm:$0xff]
  %v38 = vld [vmem:[%s0 + $0x20] sm:$0xff]
  %v39 = vld [vmem:[%s0 + $0x28] sm:$0xff]
  %v40 = vld [vmem:[%s0 + $0x30] sm:$0xff]
  %v41 = vld [vmem:[%s0 + $0x38] sm:$0xff]
  %v42 = vld [vmem:[%s1] sm:$0xf]
  %v43 = vld [vmem:[%s1 + $0x4] sm:$0xf]
  %v44 = vld [vmem:[%s1 + $0x8] sm:$0xf]
  %v45 = vld [vmem:[%s1 + $0xc] sm:$0xf]
  %v46 = vld [vmem:[%s1 + $0x10] sm:$0xf]
  %v47 = vld [vmem:[%s1 + $0x14] sm:$0xf]
  %v48 = vld [vmem:[%s1 + $0x18] sm:$0xf]
  %v49 = vld [vmem:[%s1 + $0x1c] sm:$0xf]
  %v50 = vld [vmem:[%s1 + $0x20] sm:$0xf]
  %v51 = vld [vmem:[%s1 + $0x24] sm:$0xf]
  %v52 = vld [vmem:[%s1 + $0x28] sm:$0xf]
  %v53 = vld [vmem:[%s1 + $0x2c] sm:$0xf]
  %v54 = vld [vmem:[%s1 + $0x30] sm:$0xf]
  %v55 = vld [vmem:[%s1 + $0x34] sm:$0xf]
  %v56 = vld [vmem:[%s1 + $0x38] sm:$0xf]
  %v57 = vld [vmem:[%s1 + $0x3c] sm:$0xf]
  %v58 = vld [vmem:[%s1 + $0x40] sm:$0xf]
  %v59 = vld [vmem:[%s1 + $0x44] sm:$0xf]
  %v60 = vld [vmem:[%s1 + $0x48] sm:$0xf]
  %v61 = vld [vmem:[%s1 + $0x4c] sm:$0xf]
  %v62 = vld [vmem:[%s1 + $0x50] sm:$0xf]
  %v63 = vld [vmem:[%s1 + $0x54] sm:$0xf]
  %v64 = vld [vmem:[%s1 + $0x58] sm:$0xf]
  %v65 = vld [vmem:[%s1 + $0x5c] sm:$0xf]
  %v66 = vld [vmem:[%s1 + $0x60] sm:$0xf]
  %v67 = vld [vmem:[%s1 + $0x64] sm:$0xf]
  %v68 = vld [vmem:[%s1 + $0x68] sm:$0xf]
  %v69 = vld [vmem:[%s1 + $0x6c] sm:$0xf]
  %v70 = vld [vmem:[%s1 + $0x70] sm:$0xf]
  %v71 = vld [vmem:[%s1 + $0x74] sm:$0xf]
  %v72 = vld [vmem:[%s1 + $0x78] sm:$0xf]
  %v73 = vld [vmem:[%s1 + $0x7c] sm:$0xf]
  %v74 = vld [vmem:[%s1 + $0x80] sm:$0xf]
  %v75 = vld [vmem:[%s1 + $0x84] sm:$0xf]
  %v76 = vld [vmem:[%s1 + $0x88] sm:$0xf]
  %v77 = vld [vmem:[%s1 + $0x8c] sm:$0xf]
  %v78 = vld [vmem:[%s1 + $0x90] sm:$0xf]
  %v79 = vld [vmem:[%s1 + $0x94] sm:$0xf]
  %v80 = vld [vmem:[%s1 + $0x98] sm:$0xf]
  %v81 = vld [vmem:[%s1 + $0x9c] sm:$0xf]
  %v82 = vld [vmem:[%s1 + $0xa0] sm:$0xf]
  %v83 = vld [vmem:[%s1 + $0xa4] sm:$0xf]
  %v84 = vld [vmem:[%s1 + $0xa8] sm:$0xf]
  %v85 = vld [vmem:[%s1 + $0xac] sm:$0xf]
  %v86 = vld [vmem:[%s1 + $0xb0] sm:$0xf]
  %v87 = vld [vmem:[%s1 + $0xb4] sm:$0xf]
  %v88 = vld [vmem:[%s1 + $0xb8] sm:$0xf]
  %v89 = vld [vmem:[%s1 + $0xbc] sm:$0xf]
  %v90 = vld [vmem:[%s1 + $0xc0] sm:$0xf]
  %v91 = vld [vmem:[%s1 + $0xc4] sm:$0xf]
  %v92 = vld [vmem:[%s1 + $0xc8] sm:$0xf]
  %v93 = vld [vmem:[%s1 + $0xcc] sm:$0xf]
  %v94 = vld [vmem:[%s1 + $0xd0] sm:$0xf]
  %v95 = vld [vmem:[%s1 + $0xd4] sm:$0xf]
  %v96 = vld [vmem:[%s1 + $0xd8] sm:$0xf]
  %v97 = vld [vmem:[%s1 + $0xdc] sm:$0xf]
  %v98 = vld [vmem:[%s1 + $0xe0] sm:$0xf]
  %v99 = vld [vmem:[%s1 + $0xe4] sm:$0xf]
  %v100 = vld [vmem:[%s1 + $0xe8] sm:$0xf]
  %v101 = vld [vmem:[%s1 + $0xec] sm:$0xf]
  %v102 = vld [vmem:[%s1 + $0xf0] sm:$0xf]
  %v103 = vld [vmem:[%s1 + $0xf4] sm:$0xf]
  %v104 = vld [vmem:[%s1 + $0xf8] sm:$0xf]
  %v105 = vld [vmem:[%s1 + $0xfc] sm:$0xf]
  %v106 = vld [vmem:[%s1 + $0x100] sm:$0xf]
  %v107 = vld [vmem:[%s1 + $0x104] sm:$0xf]
  %v108 = vld [vmem:[%s1 + $0x108] sm:$0xf]
  %v109 = vld [vmem:[%s1 + $0x10c] sm:$0xf]
  %v110 = vld [vmem:[%s1 + $0x110] sm:$0xf]
  %v111 = vld [vmem:[%s1 + $0x114] sm:$0xf]
  %v112 = vld [vmem:[%s1 + $0x118] sm:$0xf]
  %v113 = vld [vmem:[%s1 + $0x11c] sm:$0xf]
  %v114 = vld [vmem:[%s1 + $0x120] sm:$0xf]
  %v115 = vld [vmem:[%s1 + $0x124] sm:$0xf]
  %v116 = vld [vmem:[%s1 + $0x128] sm:$0xf]
  %v117 = vld [vmem:[%s1 + $0x12c] sm:$0xf]
  %v118 = vld [vmem:[%s1 + $0x130] sm:$0xf]
  %v119 = vld [vmem:[%s1 + $0x134] sm:$0xf]
  %v120 = vld [vmem:[%s1 + $0x138] sm:$0xf]
  %v121 = vld [vmem:[%s1 + $0x13c] sm:$0xf]
  %v122 = vld [vmem:[%s1 + $0x140] sm:$0xf]
  %v123 = vld [vmem:[%s1 + $0x144] sm:$0xf]
  %v124 = vld [vmem:[%s1 + $0x148] sm:$0xf]
  %v125 = vld [vmem:[%s1 + $0x14c] sm:$0xf]
  %v126 = vld [vmem:[%s1 + $0x150] sm:$0xf]
  %v127 = vld [vmem:[%s1 + $0x154] sm:$0xf]
  %v128 = vld [vmem:[%s1 + $0x158] sm:$0xf]
  %v129 = vld [vmem:[%s1 + $0x15c] sm:$0xf]
  %v130 = vld [vmem:[%s1 + $0x160] sm:$0xf]
  %v131 = vld [vmem:[%s1 + $0x164] sm:$0xf]
  %v132 = vld [vmem:[%s1 + $0x168] sm:$0xf]
  %v133 = vld [vmem:[%s1 + $0x16c] sm:$0xf]
  %v134 = vld [vmem:[%s1 + $0x170] sm:$0xf]
  %v135 = vld [vmem:[%s1 + $0x174] sm:$0xf]
  %v136 = vld [vmem:[%s1 + $0x178] sm:$0xf]
  %v137 = vld [vmem:[%s1 + $0x17c] sm:$0xf]
  %v138 = vld [vmem:[%s1 + $0x180] sm:$0xf]
  %v139 = vld [vmem:[%s1 + $0x184] sm:$0xf]
  %v140 = vld [vmem:[%s1 + $0x188] sm:$0xf]
  %v141 = vld [vmem:[%s1 + $0x18c] sm:$0xf]
  %v142 = vld [vmem:[%s1 + $0x190] sm:$0xf]
  %v143 = vld [vmem:[%s1 + $0x194] sm:$0xf]
  %v144 = vld [vmem:[%s1 + $0x198] sm:$0xf]
  %v145 = vld [vmem:[%s1 + $0x19c] sm:$0xf]
  %v146 = vld [vmem:[%s1 + $0x1a0] sm:$0xf]
  %v147 = vld [vmem:[%s1 + $0x1a4] sm:$0xf]
  %v148 = vld [vmem:[%s1 + $0x1a8] sm:$0xf]
  %v149 = vld [vmem:[%s1 + $0x1ac] sm:$0xf]
  %v150 = vld [vmem:[%s1 + $0x1b0] sm:$0xf]
  %v151 = vld [vmem:[%s1 + $0x1b4] sm:$0xf]
  %v152 = vld [vmem:[%s1 + $0x1b8] sm:$0xf]
  %v153 = vld [vmem:[%s1 + $0x1bc] sm:$0xf]
  %v154 = vld [vmem:[%s1 + $0x1c0] sm:$0xf]
  %v155 = vld [vmem:[%s1 + $0x1c4] sm:$0xf]
  %v156 = vld [vmem:[%s1 + $0x1c8] sm:$0xf]
  %v157 = vld [vmem:[%s1 + $0x1cc] sm:$0xf]
  %v158 = vld [vmem:[%s1 + $0x1d0] sm:$0xf]
  %v159 = vld [vmem:[%s1 + $0x1d4] sm:$0xf]
  %v160 = vld [vmem:[%s1 + $0x1d8] sm:$0xf]
  %v161 = vld [vmem:[%s1 + $0x1dc] sm:$0xf]
  %v162 = vld [vmem:[%s1 + $0x1e0] sm:$0xf]
  %v163 = vld [vmem:[%s1 + $0x1e4] sm:$0xf]
  %v164 = vld [vmem:[%s1 + $0x1e8] sm:$0xf]
  %v165 = vld [vmem:[%s1 + $0x1ec] sm:$0xf]
  %v166 = vld [vmem:[%s1 + $0x1f0] sm:$0xf]
  %v167 = vld [vmem:[%s1 + $0x1f4] sm:$0xf]
  %v168 = vld [vmem:[%s1 + $0x1f8] sm:$0xf]
  %v169 = vld [vmem:[%s1 + $0x1fc] sm:$0xf]
  %v178 = vunpack.c.l.b16 %v34
  %v179 = vunpack.c.h.b16 %v34
  %v180 = vunpack.c.l.b16 %v35
  %v181 = vunpack.c.h.b16 %v35
  %v182 = vunpack.c.l.b16 %v36
  %v183 = vunpack.c.h.b16 %v36
  %v184 = vunpack.c.l.b16 %v37
  %v185 = vunpack.c.h.b16 %v37
  %v186 = vunpack.c.l.b16 %v38
  %v187 = vunpack.c.h.b16 %v38
  %v188 = vunpack.c.l.b16 %v39
  %v189 = vunpack.c.h.b16 %v39
  %v190 = vunpack.c.l.b16 %v40
  %v191 = vunpack.c.h.b16 %v40
  %v192 = vunpack.c.l.b16 %v41
  %v193 = vunpack.c.h.b16 %v41
  %v194 = vpack.c.b16 %v186, %v178
  %v195 = vpack.c.b16 %v187, %v179
  %v196 = vpack.c.b16 %v188, %v180
  %v197 = vpack.c.b16 %v189, %v181
  %v198 = vpack.c.b16 %v190, %v182
  %v199 = vpack.c.b16 %v191, %v183
  %v200 = vpack.c.b16 %v192, %v184
  %v201 = vpack.c.b16 %v193, %v185
  %v338 = vunpack.c.l.b16 %v42
  %v339 = vunpack.c.l.b16 %v43
  %v340 = vunpack.c.l.b16 %v44
  %v341 = vunpack.c.l.b16 %v45
  %v342 = vunpack.c.l.b16 %v46
  %v343 = vunpack.c.l.b16 %v47
  %v344 = vunpack.c.l.b16 %v48
  %v345 = vunpack.c.l.b16 %v49
  %v346 = vunpack.c.l.b16 %v50
  %v347 = vunpack.c.l.b16 %v51
  %v348 = vunpack.c.l.b16 %v52
  %v349 = vunpack.c.l.b16 %v53
  %v350 = vunpack.c.l.b16 %v54
  %v351 = vunpack.c.l.b16 %v55
  %v352 = vunpack.c.l.b16 %v56
  %v353 = vunpack.c.l.b16 %v57
  %v354 = vunpack.c.l.b16 %v58
  %v355 = vunpack.c.l.b16 %v59
  %v356 = vunpack.c.l.b16 %v60
  %v357 = vunpack.c.l.b16 %v61
  %v358 = vunpack.c.l.b16 %v62
  %v359 = vunpack.c.l.b16 %v63
  %v360 = vunpack.c.l.b16 %v64
  %v361 = vunpack.c.l.b16 %v65
  %v362 = vunpack.c.l.b16 %v66
  %v363 = vunpack.c.l.b16 %v67
  %v364 = vunpack.c.l.b16 %v68
  %v365 = vunpack.c.l.b16 %v69
  %v366 = vunpack.c.l.b16 %v70
  %v367 = vunpack.c.l.b16 %v71
  %v368 = vunpack.c.l.b16 %v72
  %v369 = vunpack.c.l.b16 %v73
  %v370 = vunpack.c.l.b16 %v74
  %v371 = vunpack.c.l.b16 %v75
  %v372 = vunpack.c.l.b16 %v76
  %v373 = vunpack.c.l.b16 %v77
  %v374 = vunpack.c.l.b16 %v78
  %v375 = vunpack.c.l.b16 %v79
  %v376 = vunpack.c.l.b16 %v80
  %v377 = vunpack.c.l.b16 %v81
  %v378 = vunpack.c.l.b16 %v82
  %v379 = vunpack.c.l.b16 %v83
  %v380 = vunpack.c.l.b16 %v84
  %v381 = vunpack.c.l.b16 %v85
  %v382 = vunpack.c.l.b16 %v86
  %v383 = vunpack.c.l.b16 %v87
  %v384 = vunpack.c.l.b16 %v88
  %v385 = vunpack.c.l.b16 %v89
  %v386 = vunpack.c.l.b16 %v90
  %v387 = vunpack.c.l.b16 %v91
  %v388 = vunpack.c.l.b16 %v92
  %v389 = vunpack.c.l.b16 %v93
  %v390 = vunpack.c.l.b16 %v94
  %v391 = vunpack.c.l.b16 %v95
  %v392 = vunpack.c.l.b16 %v96
  %v393 = vunpack.c.l.b16 %v97
  %v394 = vunpack.c.l.b16 %v98
  %v395 = vunpack.c.l.b16 %v99
  %v396 = vunpack.c.l.b16 %v100
  %v397 = vunpack.c.l.b16 %v101
  %v398 = vunpack.c.l.b16 %v102
  %v399 = vunpack.c.l.b16 %v103
  %v400 = vunpack.c.l.b16 %v104
  %v401 = vunpack.c.l.b16 %v105
  %v402 = vunpack.c.l.b16 %v106
  %v403 = vunpack.c.l.b16 %v107
  %v404 = vunpack.c.l.b16 %v108
  %v405 = vunpack.c.l.b16 %v109
  %v406 = vunpack.c.l.b16 %v110
  %v407 = vunpack.c.l.b16 %v111
  %v408 = vunpack.c.l.b16 %v112
  %v409 = vunpack.c.l.b16 %v113
  %v410 = vunpack.c.l.b16 %v114
  %v411 = vunpack.c.l.b16 %v115
  %v412 = vunpack.c.l.b16 %v116
  %v413 = vunpack.c.l.b16 %v117
  %v414 = vunpack.c.l.b16 %v118
  %v415 = vunpack.c.l.b16 %v119
  %v416 = vunpack.c.l.b16 %v120
  %v417 = vunpack.c.l.b16 %v121
  %v418 = vunpack.c.l.b16 %v122
  %v419 = vunpack.c.l.b16 %v123
  %v420 = vunpack.c.l.b16 %v124
  %v421 = vunpack.c.l.b16 %v125
  %v422 = vunpack.c.l.b16 %v126
  %v423 = vunpack.c.l.b16 %v127
  %v424 = vunpack.c.l.b16 %v128
  %v425 = vunpack.c.l.b16 %v129
  %v426 = vunpack.c.l.b16 %v130
  %v427 = vunpack.c.l.b16 %v131
  %v428 = vunpack.c.l.b16 %v132
  %v429 = vunpack.c.l.b16 %v133
  %v430 = vunpack.c.l.b16 %v134
  %v431 = vunpack.c.l.b16 %v135
  %v432 = vunpack.c.l.b16 %v136
  %v433 = vunpack.c.l.b16 %v137
  %v434 = vunpack.c.l.b16 %v138
  %v435 = vunpack.c.l.b16 %v139
  %v436 = vunpack.c.l.b16 %v140
  %v437 = vunpack.c.l.b16 %v141
  %v438 = vunpack.c.l.b16 %v142
  %v439 = vunpack.c.l.b16 %v143
  %v440 = vunpack.c.l.b16 %v144
  %v441 = vunpack.c.l.b16 %v145
  %v442 = vunpack.c.l.b16 %v146
  %v443 = vunpack.c.l.b16 %v147
  %v444 = vunpack.c.l.b16 %v148
  %v445 = vunpack.c.l.b16 %v149
  %v446 = vunpack.c.l.b16 %v150
  %v447 = vunpack.c.l.b16 %v151
  %v448 = vunpack.c.l.b16 %v152
  %v449 = vunpack.c.l.b16 %v153
  %v450 = vunpack.c.l.b16 %v154
  %v451 = vunpack.c.l.b16 %v155
  %v452 = vunpack.c.l.b16 %v156
  %v453 = vunpack.c.l.b16 %v157
  %v454 = vunpack.c.l.b16 %v158
  %v455 = vunpack.c.l.b16 %v159
  %v456 = vunpack.c.l.b16 %v160
  %v457 = vunpack.c.l.b16 %v161
  %v458 = vunpack.c.l.b16 %v162
  %v459 = vunpack.c.l.b16 %v163
  %v460 = vunpack.c.l.b16 %v164
  %v461 = vunpack.c.l.b16 %v165
  %v462 = vunpack.c.l.b16 %v166
  %v463 = vunpack.c.l.b16 %v167
  %v464 = vunpack.c.l.b16 %v168
  %v465 = vunpack.c.l.b16 %v169
  %v466 = vpack.c.b16 %v339, %v338
  %v467 = vpack.c.b16 %v341, %v340
  %v468 = vpack.c.b16 %v343, %v342
  %v469 = vpack.c.b16 %v345, %v344
  %v470 = vpack.c.b16 %v347, %v346
  %v471 = vpack.c.b16 %v349, %v348
  %v472 = vpack.c.b16 %v351, %v350
  %v473 = vpack.c.b16 %v353, %v352
  %v474 = vpack.c.b16 %v355, %v354
  %v475 = vpack.c.b16 %v357, %v356
  %v476 = vpack.c.b16 %v359, %v358
  %v477 = vpack.c.b16 %v361, %v360
  %v478 = vpack.c.b16 %v363, %v362
  %v479 = vpack.c.b16 %v365, %v364
  %v480 = vpack.c.b16 %v367, %v366
  %v481 = vpack.c.b16 %v369, %v368
  %v482 = vpack.c.b16 %v371, %v370
  %v483 = vpack.c.b16 %v373, %v372
  %v484 = vpack.c.b16 %v375, %v374
  %v485 = vpack.c.b16 %v377, %v376
  %v486 = vpack.c.b16 %v379, %v378
  %v487 = vpack.c.b16 %v381, %v380
  %v488 = vpack.c.b16 %v383, %v382
  %v489 = vpack.c.b16 %v385, %v384
  %v490 = vpack.c.b16 %v387, %v386
  %v491 = vpack.c.b16 %v389, %v388
  %v492 = vpack.c.b16 %v391, %v390
  %v493 = vpack.c.b16 %v393, %v392
  %v494 = vpack.c.b16 %v395, %v394
  %v495 = vpack.c.b16 %v397, %v396
  %v496 = vpack.c.b16 %v399, %v398
  %v497 = vpack.c.b16 %v401, %v400
  %v498 = vpack.c.b16 %v403, %v402
  %v499 = vpack.c.b16 %v405, %v404
  %v500 = vpack.c.b16 %v407, %v406
  %v501 = vpack.c.b16 %v409, %v408
  %v502 = vpack.c.b16 %v411, %v410
  %v503 = vpack.c.b16 %v413, %v412
  %v504 = vpack.c.b16 %v415, %v414
  %v505 = vpack.c.b16 %v417, %v416
  %v506 = vpack.c.b16 %v419, %v418
  %v507 = vpack.c.b16 %v421, %v420
  %v508 = vpack.c.b16 %v423, %v422
  %v509 = vpack.c.b16 %v425, %v424
  %v510 = vpack.c.b16 %v427, %v426
  %v511 = vpack.c.b16 %v429, %v428
  %v512 = vpack.c.b16 %v431, %v430
  %v513 = vpack.c.b16 %v433, %v432
  %v514 = vpack.c.b16 %v435, %v434
  %v515 = vpack.c.b16 %v437, %v436
  %v516 = vpack.c.b16 %v439, %v438
  %v517 = vpack.c.b16 %v441, %v440
  %v518 = vpack.c.b16 %v443, %v442
  %v519 = vpack.c.b16 %v445, %v444
  %v520 = vpack.c.b16 %v447, %v446
  %v521 = vpack.c.b16 %v449, %v448
  %v522 = vpack.c.b16 %v451, %v450
  %v523 = vpack.c.b16 %v453, %v452
  %v524 = vpack.c.b16 %v455, %v454
  %v525 = vpack.c.b16 %v457, %v456
  %v526 = vpack.c.b16 %v459, %v458
  %v527 = vpack.c.b16 %v461, %v460
  %v528 = vpack.c.b16 %v463, %v462
  %v529 = vpack.c.b16 %v465, %v464
  %594 = vmatprep.subr.bf16.mxu0 0
  %595 = vmatpush1.bf16.msra.mxu0 %v466
  %596 = vmatprep.subr.bf16.mxu0 0
  %597 = vmatpush1.bf16.msra.mxu0 %v467
  %598 = vmatprep.subr.bf16.mxu0 0
  %599 = vmatpush1.bf16.msra.mxu0 %v468
  %600 = vmatprep.subr.bf16.mxu0 0
  %601 = vmatpush1.bf16.msra.mxu0 %v469
  %602 = vmatprep.subr.bf16.mxu0 0
  %603 = vmatpush1.bf16.msra.mxu0 %v470
  %604 = vmatprep.subr.bf16.mxu0 0
  %605 = vmatpush1.bf16.msra.mxu0 %v471
  %606 = vmatprep.subr.bf16.mxu0 0
  %607 = vmatpush1.bf16.msra.mxu0 %v472
  %608 = vmatprep.subr.bf16.mxu0 0
  %609 = vmatpush1.bf16.msra.mxu0 %v473
  %610 = vmatprep.subr.bf16.mxu0 0
  %611 = vmatpush1.bf16.msra.mxu0 %v474
  %612 = vmatprep.subr.bf16.mxu0 0
  %613 = vmatpush1.bf16.msra.mxu0 %v475
  %614 = vmatprep.subr.bf16.mxu0 0
  %615 = vmatpush1.bf16.msra.mxu0 %v476
  %616 = vmatprep.subr.bf16.mxu0 0
  %617 = vmatpush1.bf16.msra.mxu0 %v477
  %618 = vmatprep.subr.bf16.mxu0 0
  %619 = vmatpush1.bf16.msra.mxu0 %v478
  %620 = vmatprep.subr.bf16.mxu0 0
  %621 = vmatpush1.bf16.msra.mxu0 %v479
  %622 = vmatprep.subr.bf16.mxu0 0
  %623 = vmatpush1.bf16.msra.mxu0 %v480
  %624 = vmatprep.subr.bf16.mxu0 0
  %625 = vmatpush1.bf16.msra.mxu0 %v481
  %626 = vmatprep.mubr.bf16.mxu0 %v195
  %627 = vmatmul.mubr.bf16.gmra.mrb[0].mxu0 %v194
  %v628 = vpop.f32.mrb[0].mxu0
  %v629 = vadd.f32 0.0, %v628
  %v630 = vpop.f32.mrb[0].mxu0
  %v631 = vpop.f32.mrb[0].mxu0
  %v632 = vadd.f32 0.0, %v631
  %v633 = vpop.f32.mrb[0].mxu0
  %634 = vdwg.mxu0
  %635 = vmatprep.subr.bf16.mxu0 0
  %636 = vmatpush1.bf16.msra.mxu0 %v482
  %637 = vmatprep.subr.bf16.mxu0 0
  %638 = vmatpush1.bf16.msra.mxu0 %v483
  %639 = vmatprep.subr.bf16.mxu0 0
  %640 = vmatpush1.bf16.msra.mxu0 %v484
  %641 = vmatprep.subr.bf16.mxu0 0
  %642 = vmatpush1.bf16.msra.mxu0 %v485
  %643 = vmatprep.subr.bf16.mxu0 0
  %644 = vmatpush1.bf16.msra.mxu0 %v486
  %645 = vmatprep.subr.bf16.mxu0 0
  %646 = vmatpush1.bf16.msra.mxu0 %v487
  %647 = vmatprep.subr.bf16.mxu0 0
  %648 = vmatpush1.bf16.msra.mxu0 %v488
  %649 = vmatprep.subr.bf16.mxu0 0
  %650 = vmatpush1.bf16.msra.mxu0 %v489
  %651 = vmatprep.subr.bf16.mxu0 0
  %652 = vmatpush1.bf16.msra.mxu0 %v490
  %653 = vmatprep.subr.bf16.mxu0 0
  %654 = vmatpush1.bf16.msra.mxu0 %v491
  %655 = vmatprep.subr.bf16.mxu0 0
  %656 = vmatpush1.bf16.msra.mxu0 %v492
  %657 = vmatprep.subr.bf16.mxu0 0
  %658 = vmatpush1.bf16.msra.mxu0 %v493
  %659 = vmatprep.subr.bf16.mxu0 0
  %660 = vmatpush1.bf16.msra.mxu0 %v494
  %661 = vmatprep.subr.bf16.mxu0 0
  %662 = vmatpush1.bf16.msra.mxu0 %v495
  %663 = vmatprep.subr.bf16.mxu0 0
  %664 = vmatpush1.bf16.msra.mxu0 %v496
  %665 = vmatprep.subr.bf16.mxu0 0
  %666 = vmatpush1.bf16.msra.mxu0 %v497
  %667 = vmatprep.mubr.bf16.mxu0 %v197
  %668 = vmatmul.mubr.bf16.gmra.mrb[0].mxu0 %v196
  %v669 = vpop.f32.mrb[0].mxu0
  %v670 = vadd.f32 %v629, %v669
  %v671 = vpop.f32.mrb[0].mxu0
  %v672 = vpop.f32.mrb[0].mxu0
  %v673 = vadd.f32 %v632, %v672
  %v674 = vpop.f32.mrb[0].mxu0
  %675 = vdwg.mxu0
  %676 = vmatprep.subr.bf16.mxu0 0
  %677 = vmatpush1.bf16.msra.mxu0 %v498
  %678 = vmatprep.subr.bf16.mxu0 0
  %679 = vmatpush1.bf16.msra.mxu0 %v499
  %680 = vmatprep.subr.bf16.mxu0 0
  %681 = vmatpush1.bf16.msra.mxu0 %v500
  %682 = vmatprep.subr.bf16.mxu0 0
  %683 = vmatpush1.bf16.msra.mxu0 %v501
  %684 = vmatprep.subr.bf16.mxu0 0
  %685 = vmatpush1.bf16.msra.mxu0 %v502
  %686 = vmatprep.subr.bf16.mxu0 0
  %687 = vmatpush1.bf16.msra.mxu0 %v503
  %688 = vmatprep.subr.bf16.mxu0 0
  %689 = vmatpush1.bf16.msra.mxu0 %v504
  %690 = vmatprep.subr.bf16.mxu0 0
  %691 = vmatpush1.bf16.msra.mxu0 %v505
  %692 = vmatprep.subr.bf16.mxu0 0
  %693 = vmatpush1.bf16.msra.mxu0 %v506
  %694 = vmatprep.subr.bf16.mxu0 0
  %695 = vmatpush1.bf16.msra.mxu0 %v507
  %696 = vmatprep.subr.bf16.mxu0 0
  %697 = vmatpush1.bf16.msra.mxu0 %v508
  %698 = vmatprep.subr.bf16.mxu0 0
  %699 = vmatpush1.bf16.msra.mxu0 %v509
  %700 = vmatprep.subr.bf16.mxu0 0
  %701 = vmatpush1.bf16.msra.mxu0 %v510
  %702 = vmatprep.subr.bf16.mxu0 0
  %703 = vmatpush1.bf16.msra.mxu0 %v511
  %704 = vmatprep.subr.bf16.mxu0 0
  %705 = vmatpush1.bf16.msra.mxu0 %v512
  %706 = vmatprep.subr.bf16.mxu0 0
  %707 = vmatpush1.bf16.msra.mxu0 %v513
  %708 = vmatprep.mubr.bf16.mxu0 %v199
  %709 = vmatmul.mubr.bf16.gmra.mrb[0].mxu0 %v198
  %v710 = vpop.f32.mrb[0].mxu0
  %v711 = vadd.f32 %v670, %v710
  %v712 = vpop.f32.mrb[0].mxu0
  %v713 = vpop.f32.mrb[0].mxu0
  %v714 = vadd.f32 %v673, %v713
  %v715 = vpop.f32.mrb[0].mxu0
  %716 = vdwg.mxu0
  %717 = vmatprep.subr.bf16.mxu0 0
  %718 = vmatpush1.bf16.msra.mxu0 %v514
  %719 = vmatprep.subr.bf16.mxu0 0
  %720 = vmatpush1.bf16.msra.mxu0 %v515
  %721 = vmatprep.subr.bf16.mxu0 0
  %722 = vmatpush1.bf16.msra.mxu0 %v516
  %723 = vmatprep.subr.bf16.mxu0 0
  %724 = vmatpush1.bf16.msra.mxu0 %v517
  %725 = vmatprep.subr.bf16.mxu0 0
  %726 = vmatpush1.bf16.msra.mxu0 %v518
  %727 = vmatprep.subr.bf16.mxu0 0
  %728 = vmatpush1.bf16.msra.mxu0 %v519
  %729 = vmatprep.subr.bf16.mxu0 0
  %730 = vmatpush1.bf16.msra.mxu0 %v520
  %731 = vmatprep.subr.bf16.mxu0 0
  %732 = vmatpush1.bf16.msra.mxu0 %v521
  %733 = vmatprep.subr.bf16.mxu0 0
  %734 = vmatpush1.bf16.msra.mxu0 %v522
  %735 = vmatprep.subr.bf16.mxu0 0
  %736 = vmatpush1.bf16.msra.mxu0 %v523
  %737 = vmatprep.subr.bf16.mxu0 0
  %738 = vmatpush1.bf16.msra.mxu0 %v524
  %739 = vmatprep.subr.bf16.mxu0 0
  %740 = vmatpush1.bf16.msra.mxu0 %v525
  %741 = vmatprep.subr.bf16.mxu0 0
  %742 = vmatpush1.bf16.msra.mxu0 %v526
  %743 = vmatprep.subr.bf16.mxu0 0
  %744 = vmatpush1.bf16.msra.mxu0 %v527
  %745 = vmatprep.subr.bf16.mxu0 0
  %746 = vmatpush1.bf16.msra.mxu0 %v528
  %747 = vmatprep.subr.bf16.mxu0 0
  %748 = vmatpush1.bf16.msra.mxu0 %v529
  %749 = vmatprep.mubr.bf16.mxu0 %v201
  %750 = vmatmul.mubr.bf16.gmra.mrb[0].mxu0 %v200
  %v751 = vpop.f32.mrb[0].mxu0
  %v752 = vadd.f32 %v711, %v751
  %v753 = vpop.f32.mrb[0].mxu0
  %v754 = vpop.f32.mrb[0].mxu0
  %v755 = vadd.f32 %v714, %v754
  %v756 = vpop.f32.mrb[0].mxu0
  %757 = vdwg.mxu0
  %v758 = vadd.f32 %v32, %v752
  %v759 = vadd.f32 %v33, %v755
  %760 = vst [vmem:[#allocation2] sm:$0xff] %v758
  %761 = vst [vmem:[#allocation2 + $0x8] sm:$0xff] %v759
  // Predicated region
  $region22: #{_ccat_detector_impl.1} parent=0 // pred_check
    %p762 = pneg %p19
  $region23: #{_ccat_detector_impl.1} parent=0 // pred_check_branch
    %764 = sbr.rel (%p762) target = $region25
  $region24: #{_ccat_detector_impl.1} parent=0 // pred_region
    %v765 = vld [vmem:[#allocation2] sm:$0xff]
    %v766 = vld [vmem:[#allocation2 + $0x8] sm:$0xff]
    %767 = vmax.xlane.f32.xlu0 %v765
    %v768 = vpop.xlane.xlu0 %767
    %769 = vmax.xlane.f32.xlu0 %v766
    %v770 = vpop.xlane.xlu0 %769
    %v771 = vsub.f32 %v765, %v768
    %v772 = vsub.f32 %v766, %v770
    %v773 = vmul.f32 %v771, 1.442695
    %v774 = vpow.pop %v773
    %v775 = vmul.f32 %v772, 1.442695
    %v776 = vpow.pop %v775
    %777 = vadd.xlane.f32.xlu0 %v774
    %v778 = vpop.xlane.xlu0 %777
    %779 = vadd.xlane.f32.xlu0 %v776
    %v780 = vpop.xlane.xlu0 %779
    %s781 = sld [smem:[#allocation3]]
    %v782 = vstv %s781
    %vm783 = vcmp.lt.f32.partialorder %v778, %v782
    %vm784 = vcmp.lt.f32.partialorder %v780, %v782
    %v785 = vsel %vm783, 1, 0
    %v786 = vsel %vm784, 1, 0
    %787 = vst [vmem:[%s4] sm:$0xff] %v785
    %788 = vst [vmem:[%s4 + $0x8] sm:$0xff] %v786
  $region25: #{_ccat_detector_impl.1} parent=0 // pred_fallthru
    _
  // Predicated region
  $region26: #{_ccat_detector_impl.1} parent=0 // pred_check
    _
  $region27: #{_ccat_detector_impl.1} parent=0 // pred_check_branch
    %790 = sbr.rel (0) target = $region29
  $region28: #{_ccat_detector_impl.1} parent=0 // pred_region
    _
  $region29: #{_ccat_detector_impl.1} parent=0 // pred_fallthru
    _
  // Predicated region
  $region30: #{_ccat_detector_impl.1} parent=0 // pred_check
    _
  $region31: #{_ccat_detector_impl.1} parent=0 // pred_check_branch
    %792 = sbr.rel (0) target = $region33
  $region32: #{_ccat_detector_impl.1} parent=0 // pred_region
    _
  $region33: #{_ccat_detector_impl.1} parent=0 // pred_fallthru
    _

</llo_original>
